<compile_context>
chip_gen: v6e
topology: v6e:2x2x1
jax: 0.10.0
libtpu: 0.0.40
codegen_flags: <defaults>
</compile_context>

<pallas_src>
import jax
import jax.numpy as jnp
from jax import lax
from jax.experimental import pallas as pl
from jax.experimental.pallas import tpu as pltpu


# ---------------------------------------------------------------------------
# Kernel
# ---------------------------------------------------------------------------
def qwen_mlp_kernel(x_ref, w12_ref, wpt_ref, o_ref, acc_ref):
    k = pl.program_id(1)

    @pl.when(k == 0)
    def _init():
        acc_ref[...] = jnp.zeros_like(acc_ref)

    x = x_ref[...]                      # (tm, H)
    tf = w12_ref.shape[1]
    H = w12_ref.shape[2]

    if tf % 128 == 0:
        # Fused up-projection: one MXU weight-push/drain per k-step.
        w12 = w12_ref[...].reshape(2 * tf, H)                       # (2*tf, H)
        a12 = lax.dot_general(x, w12, (((1,), (1,)), ((), ())),
                              preferred_element_type=jnp.float32)   # (tm, 2*tf)
        a1 = a12[:, :tf]
        a2 = a12[:, tf:]
    else:
        # tf not lane-aligned (tiny shapes): keep the two separate dots.
        a1 = lax.dot_general(x, w12_ref[0], (((1,), (1,)), ((), ())),
                             preferred_element_type=jnp.float32)
        a2 = lax.dot_general(x, w12_ref[1], (((1,), (1,)), ((), ())),
                             preferred_element_type=jnp.float32)

    # SwiGLU gate in f32 (safe on v5e which has no bf16 VPU/EUP path).
    inter = a1 * (a2 * jax.nn.sigmoid(a2))                          # (tm, tf) f32

    # Partial down-projection for this ff-chunk, canonical (M,K)x(K,N) orientation.
    wpt = wpt_ref[...]                                              # (tf, H)
    acc_ref[...] += lax.dot_general(inter.astype(wpt.dtype), wpt,
                                    (((1,), (0,)), ((), ())),
                                    preferred_element_type=jnp.float32)  # (tm, H)

    @pl.when(k == pl.num_programs(1) - 1)
    def _writeback():
        o_ref[...] = acc_ref[...].astype(o_ref.dtype)


# ---------------------------------------------------------------------------
# Weight preparation (call ONCE at weight-load time, not per forward)
# ---------------------------------------------------------------------------
def prepare_qwen_mlp_weights(w1, w2, c_proj):
    """w1, w2: (ff, H) PyTorch Linear weights; c_proj: (H, ff).

    Returns (w12, c_proj_t) with w12: (2, ff, H) and c_proj_t: (ff, H)."""
    ff, H = w1.shape
    assert w2.shape == (ff, H), "w2 shape mismatch"
    assert c_proj.shape == (H, ff), "c_proj shape mismatch"
    w12 = jnp.stack([w1, w2], axis=0)          # (2, ff, H) -- one DMA stream per chunk
    c_proj_t = jnp.transpose(c_proj, (1, 0))   # (ff, H)    -- contiguous chunk DMA
    return w12, c_proj_t


# ---------------------------------------------------------------------------
# Tile / VMEM selection helpers
# ---------------------------------------------------------------------------
def _round_up(n, m):
    return ((n + m - 1) // m) * m


def _tpu_defaults():
    kind = ""
    try:
        kind = jax.devices()[0].device_kind.lower()
    except Exception:
        pass
    if "v7" in kind or "tpu7" in kind:
        # 64 MiB physical VMEM, 2 TensorCores, ridge ~310 flops/byte.
        return dict(tm=512, tf=256, vmem=56 * 1024 * 1024, two_tc=True)
    if "v6" in kind:
        # 128 MiB VMEM, ridge ~650 flops/byte -> big row tile.
        return dict(tm=512, tf=512, vmem=96 * 1024 * 1024, two_tc=False)
    if "v5" in kind:
        # v5e: ridge ~245 flops/byte.
        return dict(tm=384, tf=512, vmem=96 * 1024 * 1024, two_tc=False)
    # Unknown generation: conservative (safe on 64 MiB-VMEM parts).
    return dict(tm=256, tf=256, vmem=48 * 1024 * 1024, two_tc=False)


def _clamp_vmem_limit(requested):
    try:
        cap = pltpu.get_tpu_info().vmem_capacity_bytes
        return max(16 * 1024 * 1024, min(requested, cap - 8 * 1024 * 1024))
    except Exception:
        return requested


def _fit_tiles(tm, tf, H, dtype_bytes, vmem_limit):
    """Shrink preferred tiles until the estimated VMEM footprint fits."""
    def est(tm_, tf_):
        return (2 * tm_ * H * dtype_bytes        # x, double-buffered
                + 2 * tm_ * H * dtype_bytes      # out, double-buffered
                + 2 * 2 * tf_ * H * dtype_bytes  # stacked w1/w2, double-buffered
                + 2 * tf_ * H * dtype_bytes      # c_proj_t chunk, double-buffered
                + tm_ * H * 4                    # f32 accumulator scratch
                + 4 * tm_ * tf_ * 4)             # a12/a1/a2/inter f32 live values
    while est(tm, tf) > int(0.85 * vmem_limit) and (tm > 64 or tf > 128):
        if tm >= tf and tm > 64:
            tm //= 2
        elif tf > 128:
            tf //= 2
        else:
            tm = max(8, tm // 2)
    return tm, tf


def _pick_ff_tile(ff, preferred):
    """Lane-aligned (multiple of 128) divisor of ff, or the full dim."""
    if ff <= preferred:
        return ff
    t = (preferred // 128) * 128
    while t >= 128:
        if ff % t == 0:
            return t
        t -= 128
    return ff  # full dim is always a legal block


def _pick_row_tile(M, preferred):
    """Returns (tm, M_padded): tm is a multiple of 8 (or the full padded dim)."""
    if M <= preferred:
        tm = _round_up(M, 8)
        return tm, tm
    t = (preferred // 8) * 8
    while t >= 8:
        if M % t == 0:
            return t, M
        t -= 8
    t = (preferred // 8) * 8
    return t, _round_up(M, t)  # pad rows; padded rows sliced off after the call


# ---------------------------------------------------------------------------
# Wrapper
# ---------------------------------------------------------------------------
def qwen_mlp(hidden_states, w12, c_proj_t, *, tm=None, tf=None,
             vmem_limit_bytes=None):
    """hidden_states: (B, S, H); w12: (2, ff, H); c_proj_t: (ff, H).

    Use prepare_qwen_mlp_weights() once to build w12 / c_proj_t from the
    PyTorch-layout weights."""
    B, S, H = hidden_states.shape
    assert w12.ndim == 3 and w12.shape[0] == 2 and w12.shape[2] == H
    ff = w12.shape[1]
    assert c_proj_t.shape == (ff, H), "c_proj_t shape mismatch (expect (ff, H))"

    defaults = _tpu_defaults()
    vmem_limit = _clamp_vmem_limit(
        defaults["vmem"] if vmem_limit_bytes is None else vmem_limit_bytes)
    tm_pref = defaults["tm"] if tm is None else tm
    tf_pref = defaults["tf"] if tf is None else tf

    dtype_bytes = jnp.dtype(hidden_states.dtype).itemsize
    tm_pref, tf_pref = _fit_tiles(tm_pref, tf_pref, H, dtype_bytes, vmem_limit)

    M = B * S
    tf = _pick_ff_tile(ff, tf_pref)
    tm, M_pad = _pick_row_tile(M, tm_pref)

    # v7x has 2 TensorCores: make sure the "parallel" M axis has extent >= 2.
    if defaults["two_tc"] and (M_pad // tm) == 1 and tm > 8:
        tm = max(8, ((tm // 2) // 8) * 8)
        M_pad = _round_up(M, tm)

    x2d = hidden_states.reshape(M, H)
    if M_pad > M:
        x2d = jnp.pad(x2d, ((0, M_pad - M), (0, 0)))

    grid = (M_pad // tm, ff // tf)   # reduction (ff) axis innermost

    out2d = pl.pallas_call(
        qwen_mlp_kernel,
        out_shape=jax.ShapeDtypeStruct((M_pad, H), hidden_states.dtype),
        grid_spec=pltpu.PrefetchScalarGridSpec(
            num_scalar_prefetch=0,
            grid=grid,
            in_specs=[
                pl.BlockSpec((tm, H), lambda i, k: (i, 0)),        # x rows (resident over k)
                pl.BlockSpec((2, tf, H), lambda i, k: (0, k, 0)),  # stacked W1/W2 ff-chunk
                pl.BlockSpec((tf, H), lambda i, k: (k, 0)),        # c_proj_t ff-chunk (contiguous)
            ],
            out_specs=pl.BlockSpec((tm, H), lambda i, k: (i, 0)),  # lane-dense full-H tile
            scratch_shapes=[pltpu.VMEM((tm, H), jnp.float32)],     # f32 accumulator
        ),
        compiler_params=pltpu.CompilerParams(
            dimension_semantics=("parallel", "arbitrary"),
            vmem_limit_bytes=vmem_limit,
        ),
    )(x2d, w12, c_proj_t)

    return out2d[:M].reshape(B, S, H)


# ---------------------------------------------------------------------------
# Pure-JAX reference
# ---------------------------------------------------------------------------
def reference_mlp(hidden_states, w1, w2, c_proj):
    x = hidden_states.astype(jnp.float32)
    a1 = jnp.einsum("bsh,fh->bsf", x, w1.astype(jnp.float32))
    a2 = jnp.einsum("bsh,fh->bsf", x, w2.astype(jnp.float32))
    inter = a1 * (a2 * jax.nn.sigmoid(a2))
    return jnp.einsum("bsf,hf->bsh", inter, c_proj.astype(jnp.float32))


if __name__ == "__main__":
    key = jax.random.PRNGKey(0)
    kx, k1, k2, k3 = jax.random.split(key, 4)

    # --- Small config matching the module: hidden=32, intermediate=128 -> ff=64 ---
    B, S, H = 2, 8, 32
    FF = 64  # intermediate_size // 2

    x = jax.random.normal(kx, (B, S, H), dtype=jnp.float32)
    w1 = jax.random.normal(k1, (FF, H), dtype=jnp.float32) * (1.0 / H ** 0.5)
    w2 = jax.random.normal(k2, (FF, H), dtype=jnp.float32) * (1.0 / H ** 0.5)
    c_proj = jax.random.normal(k3, (H, FF), dtype=jnp.float32) * (1.0 / FF ** 0.5)

    # Weight prep is a one-time, weight-load-time step (hoisted out of the hot path).
    w12, cpt = prepare_qwen_mlp_weights(w1, w2, c_proj)

    out = jax.block_until_ready(qwen_mlp(x, w12, cpt))
    ref = reference_mlp(x, w1, w2, c_proj)
    assert out.shape == (B, S, H)
    assert jnp.allclose(out, ref, atol=1e-4, rtol=1e-4), "f32 mismatch vs reference"

    # --- bf16 path (production dtype): f32 accumulation inside the kernel ---
    xb = x.astype(jnp.bfloat16)
    w12b, cptb = prepare_qwen_mlp_weights(
        w1.astype(jnp.bfloat16), w2.astype(jnp.bfloat16), c_proj.astype(jnp.bfloat16))
    out_bf16 = jax.block_until_ready(qwen_mlp(xb, w12b, cptb))
    ref_bf16 = reference_mlp(xb, w1.astype(jnp.bfloat16), w2.astype(jnp.bfloat16),
                             c_proj.astype(jnp.bfloat16))
    assert jnp.allclose(out_bf16.astype(jnp.float32), ref_bf16,
                        atol=5e-2, rtol=5e-2), "bf16 mismatch vs reference"

    # --- Exercise the tiled-reduction + fused-up-projection path (tf multiple of 128) ---
    B2, S2, H2, FF2 = 2, 64, 256, 512
    kx2, k12, k22, k32 = jax.random.split(jax.random.PRNGKey(0), 4)
    x2 = jax.random.normal(kx2, (B2, S2, H2), dtype=jnp.float32)
    w1_2 = jax.random.normal(k12, (FF2, H2), dtype=jnp.float32) * (1.0 / H2 ** 0.5)
    w2_2 = jax.random.normal(k22, (FF2, H2), dtype=jnp.float32) * (1.0 / H2 ** 0.5)
    cp_2 = jax.random.normal(k32, (H2, FF2), dtype=jnp.float32) * (1.0 / FF2 ** 0.5)

    w12_2, cpt_2 = prepare_qwen_mlp_weights(w1_2, w2_2, cp_2)
    out2 = jax.block_until_ready(qwen_mlp(x2, w12_2, cpt_2, tm=64, tf=128))
    ref2 = reference_mlp(x2, w1_2, w2_2, cp_2)
    assert jnp.allclose(out2, ref2, atol=1e-3, rtol=1e-3), "tiled-reduction mismatch"

    print("KERNEL_OK")
</pallas_src>

<mosaic_0001>
module attributes {stable_mosaic.version = 11 : i64} {
  func.func @qwen_mlp_kernel(%arg0: i32, %arg1: i32, %arg2: memref<16x32xf32, #tpu.memory_space<vmem>>, %arg3: memref<2x64x32xf32, #tpu.memory_space<vmem>>, %arg4: memref<64x32xf32, #tpu.memory_space<vmem>>, %arg5: memref<16x32xf32, #tpu.memory_space<vmem>>, %arg6: memref<16x32xf32, #tpu.memory_space<vmem>>) attributes {dimension_semantics = [#tpu.dimension_semantics<parallel>, #tpu.dimension_semantics<arbitrary>], iteration_bounds = array<i64: 1, 1>, scalar_prefetch = 0 : i64, scratch_operands = 1 : i64, tpu.core_type = #tpu.core_type<tc>, window_params = [{transform_indices = @transform_0, window_bounds = array<i64: 16, 32>}, {transform_indices = @transform_1, window_bounds = array<i64: 2, 64, 32>}, {transform_indices = @transform_2, window_bounds = array<i64: 64, 32>}, {transform_indices = @transform_3, window_bounds = array<i64: 16, 32>}]} {
    %c0_i32 = arith.constant 0 : i32
    %0 = arith.cmpi eq, %arg1, %c0_i32 : i32
    %1 = arith.extui %0 : i1 to i32
    %c0_i32_0 = arith.constant 0 : i32
    %2 = arith.cmpi ne, %1, %c0_i32_0 : i32
    scf.if %2 {
      %cst_18 = arith.constant 0.000000e+00 : f32
      %25 = vector.broadcast %cst_18 : f32 to vector<16x32xf32>
      %c0_19 = arith.constant 0 : index
      %c0_20 = arith.constant 0 : index
      %26 = vector.load %arg6[%c0_19, %c0_20] : memref<16x32xf32, #tpu.memory_space<vmem>>, vector<16x32xf32>
      tpu.vector_store %arg6[%c0_19, %c0_20], %25 {strides = array<i32>} : memref<16x32xf32, #tpu.memory_space<vmem>>, vector<16x32xf32>,
    } else {
    }
    %c0 = arith.constant 0 : index
    %c0_1 = arith.constant 0 : index
    %3 = vector.load %arg2[%c0, %c0_1] : memref<16x32xf32, #tpu.memory_space<vmem>>, vector<16x32xf32>
    %c0_2 = arith.constant 0 : index
    %c0_3 = arith.constant 0 : index
    %c0_4 = arith.constant 0 : index
    %4 = vector.load %arg3[%c0_2, %c0_3, %c0_4] : memref<2x64x32xf32, #tpu.memory_space<vmem>>, vector<1x64x32xf32>
    %5 = vector.shape_cast %4 : vector<1x64x32xf32> to vector<64x32xf32>
    %cst = arith.constant dense<0.000000e+00> : vector<16x64xf32>
    %6 = tpu.matmul %3, %5, %cst {dimension_numbers = #tpu.dot_dimension_numbers<[1], [1], [0], [0], [0, 0, 1, 0], [], []>} : vector<16x32xf32>, vector<64x32xf32>, vector<16x64xf32> -> vector<16x64xf32>
    %c1 = arith.constant 1 : index
    %c0_5 = arith.constant 0 : index
    %c0_6 = arith.constant 0 : index
    %7 = vector.load %arg3[%c1, %c0_5, %c0_6] : memref<2x64x32xf32, #tpu.memory_space<vmem>>, vector<1x64x32xf32>
    %8 = vector.shape_cast %7 : vector<1x64x32xf32> to vector<64x32xf32>
    %cst_7 = arith.constant dense<0.000000e+00> : vector<16x64xf32>
    %9 = tpu.matmul %3, %8, %cst_7 {dimension_numbers = #tpu.dot_dimension_numbers<[1], [1], [0], [0], [0, 0, 1, 0], [], []>} : vector<16x32xf32>, vector<64x32xf32>, vector<16x64xf32> -> vector<16x64xf32>
    %10 = arith.negf %9 : vector<16x64xf32>
    %11 = math.exp %10 : vector<16x64xf32>
    %cst_8 = arith.constant 1.000000e+00 : f32
    %12 = vector.broadcast %cst_8 : f32 to vector<16x64xf32>
    %13 = arith.addf %12, %11 : vector<16x64xf32>
    %14 = arith.divf %12, %13 : vector<16x64xf32>
    %15 = arith.mulf %9, %14 : vector<16x64xf32>
    %16 = arith.mulf %6, %15 : vector<16x64xf32>
    %c0_9 = arith.constant 0 : index
    %c0_10 = arith.constant 0 : index
    %17 = vector.load %arg4[%c0_9, %c0_10] : memref<64x32xf32, #tpu.memory_space<vmem>>, vector<64x32xf32>
    %c0_11 = arith.constant 0 : index
    %c0_12 = arith.constant 0 : index
    %18 = vector.load %arg6[%c0_11, %c0_12] : memref<16x32xf32, #tpu.memory_space<vmem>>, vector<16x32xf32>
    %cst_13 = arith.constant dense<0.000000e+00> : vector<16x32xf32>
    %19 = tpu.matmul %16, %17, %cst_13 {dimension_numbers = #tpu.dot_dimension_numbers<[1], [0], [0], [1], [0, 0, 1, 1], [], []>} : vector<16x64xf32>, vector<64x32xf32>, vector<16x32xf32> -> vector<16x32xf32>
    %20 = arith.addf %18, %19 : vector<16x32xf32>
    %c0_14 = arith.constant 0 : index
    %c0_15 = arith.constant 0 : index
    %21 = vector.load %arg6[%c0_14, %c0_15] : memref<16x32xf32, #tpu.memory_space<vmem>>, vector<16x32xf32>
    tpu.vector_store %arg6[%c0_14, %c0_15], %20 {strides = array<i32>} : memref<16x32xf32, #tpu.memory_space<vmem>>, vector<16x32xf32>,
    %c0_i32_16 = arith.constant 0 : i32
    %22 = arith.cmpi eq, %arg1, %c0_i32_16 : i32
    %23 = arith.extui %22 : i1 to i32
    %c0_i32_17 = arith.constant 0 : i32
    %24 = arith.cmpi ne, %23, %c0_i32_17 : i32
    scf.if %24 {
      %c0_18 = arith.constant 0 : index
      %c0_19 = arith.constant 0 : index
      %25 = vector.load %arg6[%c0_18, %c0_19] : memref<16x32xf32, #tpu.memory_space<vmem>>, vector<16x32xf32>
      %c0_20 = arith.constant 0 : index
      %c0_21 = arith.constant 0 : index
      %26 = vector.load %arg5[%c0_20, %c0_21] : memref<16x32xf32, #tpu.memory_space<vmem>>, vector<16x32xf32>
      tpu.vector_store %arg5[%c0_20, %c0_21], %25 {strides = array<i32>} : memref<16x32xf32, #tpu.memory_space<vmem>>, vector<16x32xf32>,
    } else {
    }
    return
  }
  func.func @transform_0(%arg0: i32, %arg1: i32) -> (i32, i32) {
    %c0_i32 = arith.constant 0 : i32
    %c0_i32_0 = arith.constant 0 : i32
    return %arg0, %c0_i32 : i32, i32
  }
  func.func @transform_1(%arg0: i32, %arg1: i32) -> (i32, i32, i32) {
    %c0_i32 = arith.constant 0 : i32
    %c0_i32_0 = arith.constant 0 : i32
    %c0_i32_1 = arith.constant 0 : i32
    return %c0_i32, %arg1, %c0_i32_0 : i32, i32, i32
  }
  func.func @transform_2(%arg0: i32, %arg1: i32) -> (i32, i32) {
    %c0_i32 = arith.constant 0 : i32
    %c0_i32_0 = arith.constant 0 : i32
    return %arg1, %c0_i32 : i32, i32
  }
  func.func @transform_3(%arg0: i32, %arg1: i32) -> (i32, i32) {
    %c0_i32 = arith.constant 0 : i32
    %c0_i32_0 = arith.constant 0 : i32
    return %arg0, %c0_i32 : i32, i32
  }
}

</mosaic_0001>

<llo_original>
// kernel: tpu_custom_call.1
$region0: #{tpu_custom_call.1}
  #allocation0 [shape = 'u32[]', space=smem, size = 0x4, offset = 0x4, fixed_abs, tag = 'smem constant byte address 0x4 - core index']
  #allocation1 [shape = 'u32[144,128]{1,0:T(1,128)}', space=vmem, size = 0x12000, scoped, tag = 'internal scratch']
  #allocation2 [shape = 'f32[16,32]{1,0:T(8,128)}', space=vmem, size = 0x2000, scoped, tag = 'scratch operand']
  %s0 = inlined_call_operand.vmem [shape: f32[16,32], index: 0, kind: input, shape index: {}]
  %s1 = inlined_call_operand.vmem [shape: f32[2,64,32], index: 1, kind: input, shape index: {}]
  %s2 = inlined_call_operand.vmem [shape: f32[64,32], index: 2, kind: input, shape index: {}]
  %s3 = inlined_call_operand.hbm [shape: f32[16,32], index: 3, kind: output, shape index: {}]
  %s4 = sld [smem:[#allocation0]]
  $region30: #{tpu_custom_call.1} parent=0
    _
  %s6 = ssub.s32 1, %s4
  %s7 = scalar_select 0, %s6, %s4
  $region1: #{tpu_custom_call.1} parent=0
    #allocation3 [shape = 'u8[8192]{0}', space=vmem, size = 0x2000, scoped, tag = 'output window, operand 0, single buffered']
    #allocation4 [shape = 's32[1]{0}', space=sflag, size = 0x4, scoped, tag = 'scoped memory for tpu_custom_call.1']
    %8 = vsyncpa [#allocation4], 0
    // Predicated region
    $region2: #{tpu_custom_call.1} parent=1 // pred_check
      _
    $region3: #{tpu_custom_call.1} parent=1 // pred_check_branch
      %10 = sbr.rel (0) target = $region5
    $region4: #{tpu_custom_call.1} parent=1 // pred_region
      _
    $region5: #{tpu_custom_call.1} parent=1 // pred_fallthru
      _
    // Predicated region
    $region6: #{tpu_custom_call.1} parent=1 // pred_check
      _
    $region7: #{tpu_custom_call.1} parent=1 // pred_check_branch
      %12 = sbr.rel (0) target = $region9
    $region8: #{tpu_custom_call.1} parent=1 // pred_region
      _
    $region9: #{tpu_custom_call.1} parent=1 // pred_fallthru
      _
    // Predicated region
    $region10: #{tpu_custom_call.1} parent=1 // pred_check
      _
    $region11: #{tpu_custom_call.1} parent=1 // pred_check_branch
      %14 = sbr.rel (0) target = $region13
    $region12: #{tpu_custom_call.1} parent=1 // pred_region
      _
    $region13: #{tpu_custom_call.1} parent=1 // pred_fallthru
      _
    %p15 = scmp.eq.s32.totalorder 0, 0
    // Predicated region
    $region14: #{tpu_custom_call.1} parent=1 // pred_check
      %p16 = pneg %p15
    $region15: #{tpu_custom_call.1} parent=1 // pred_check_branch
      %18 = sbr.rel (%p16) target = $region17
    $region16: #{tpu_custom_call.1} parent=1 // pred_region
      %vm19 = vcmask 261120
      %20 = vst.msk [vmem:[#allocation2] sm:$0xff] %vm19, 0.0
      %21 = vst.msk [vmem:[#allocation2 + $0x8] sm:$0xff] %vm19, 0.0
    $region17: #{tpu_custom_call.1} parent=1 // pred_fallthru
      _
    %v22 = vld [vmem:[%s0] sm:$0xff]
    %v23 = vld [vmem:[%s0 + $0x8] sm:$0xff]
    %v24 = vld [vmem:[%s1] sm:$0xff]
    %v25 = vld [vmem:[%s1 + $0x8] sm:$0xff]
    %v26 = vld [vmem:[%s1 + $0x10] sm:$0xff]
    %v27 = vld [vmem:[%s1 + $0x18] sm:$0xff]
    %v28 = vld [vmem:[%s1 + $0x20] sm:$0xff]
    %v29 = vld [vmem:[%s1 + $0x28] sm:$0xff]
    %v30 = vld [vmem:[%s1 + $0x30] sm:$0xff]
    %v31 = vld [vmem:[%s1 + $0x38] sm:$0xff]
    %vm32 = vcmask 261120
    %v34 = vsel %vm32, %v22, 0
    %v37 = vsel %vm32, %v23, 0
    %v40 = vsel %vm32, %v24, 0
    %v43 = vsel %vm32, %v25, 0
    %v46 = vsel %vm32, %v26, 0
    %v49 = vsel %vm32, %v27, 0
    %v52 = vsel %vm32, %v28, 0
    %v55 = vsel %vm32, %v29, 0
    %v58 = vsel %vm32, %v30, 0
    %v61 = vsel %vm32, %v31, 0
    %63 = vmatprep.subr.mxu0 0.0
    %64 = vmatpush1.xpose.msra.mxu0 0.0
    %65 = vmatprep.subr.mxu0 0.0
    %66 = vmatpush1.xpose.msra.mxu0 0.0
    %67 = vmatprep.subr.mxu0 0.0
    %68 = vmatpush1.xpose.msra.mxu0 0.0
    %69 = vmatprep.subr.mxu0 0.0
    %70 = vmatpush1.xpose.msra.mxu0 0.0
    %71 = vmatprep.subr.mxu0 0.0
    %72 = vmatpush1.xpose.msra.mxu0 0.0
    %73 = vmatprep.subr.mxu0 0.0
    %74 = vmatpush1.xpose.msra.mxu0 0.0
    %75 = vmatprep.subr.mxu0 0.0
    %76 = vmatpush1.xpose.msra.mxu0 0.0
    %77 = vmatprep.subr.mxu0 0.0
    %78 = vmatpush1.xpose.msra.mxu0 0.0
    %79 = vmatprep.subr.mxu0 0.0
    %80 = vmatpush1.xpose.msra.mxu0 %v61
    %81 = vmatprep.subr.mxu0 0.0
    %82 = vmatpush1.xpose.msra.mxu0 %v58
    %83 = vmatprep.subr.mxu0 0.0
    %84 = vmatpush1.xpose.msra.mxu0 %v55
    %85 = vmatprep.subr.mxu0 0.0
    %86 = vmatpush1.xpose.msra.mxu0 %v52
    %87 = vmatprep.subr.mxu0 0.0
    %88 = vmatpush1.xpose.msra.mxu0 %v49
    %89 = vmatprep.subr.mxu0 0.0
    %90 = vmatpush1.xpose.msra.mxu0 %v46
    %91 = vmatprep.subr.mxu0 0.0
    %92 = vmatpush1.xpose.msra.mxu0 %v43
    %93 = vmatprep.subr.mxu0 0.0
    %94 = vmatpush1.xpose.msra.mxu0 %v40
    %95 = vmatprep.subr.mxu0 0.0
    %96 = vmatpush2.xpose.msra.mxu0 0.0
    %97 = vmatprep.subr.mxu0 0.0
    %98 = vmatpush2.xpose.msra.mxu0 0.0
    %99 = vmatprep.subr.mxu0 0.0
    %100 = vmatpush2.xpose.msra.mxu0 0.0
    %101 = vmatprep.subr.mxu0 0.0
    %102 = vmatpush2.xpose.msra.mxu0 0.0
    %103 = vmatprep.subr.mxu0 0.0
    %104 = vmatpush2.xpose.msra.mxu0 0.0
    %105 = vmatprep.subr.mxu0 0.0
    %106 = vmatpush2.xpose.msra.mxu0 0.0
    %107 = vmatprep.subr.mxu0 0.0
    %108 = vmatpush2.xpose.msra.mxu0 0.0
    %109 = vmatprep.subr.mxu0 0.0
    %110 = vmatpush2.xpose.msra.mxu0 0.0
    %111 = vmatprep.subr.mxu0 0.0
    %112 = vmatpush2.xpose.msra.mxu0 0.0
    %113 = vmatprep.subr.mxu0 0.0
    %114 = vmatpush2.xpose.msra.mxu0 0.0
    %115 = vmatprep.subr.mxu0 0.0
    %116 = vmatpush2.xpose.msra.mxu0 0.0
    %117 = vmatprep.subr.mxu0 0.0
    %118 = vmatpush2.xpose.msra.mxu0 0.0
    %119 = vmatprep.subr.mxu0 0.0
    %120 = vmatpush2.xpose.msra.mxu0 0.0
    %121 = vmatprep.subr.mxu0 0.0
    %122 = vmatpush2.xpose.msra.mxu0 0.0
    %123 = vmatprep.subr.mxu0 0.0
    %124 = vmatpush2.xpose.msra.mxu0 0.0
    %125 = vmatprep.subr.mxu0 0.0
    %126 = vmatpush2.xpose.msra.mxu0 0.0
    %127 = vmatprep.mubr.f32.mxu0 0.0
    %128 = vmatmul.mubr.f32.gmra.mxu0 %v34
    %v129 = vpop.f32.mrf.mxu0
    %v130 = vadd.f32 0.0, %v129
    %v131 = vpop.f32.mrf.mxu0
    %132 = vmatprep.mubr.f32.mxu0 0.0
    %133 = vmatmul.mubr.f32.gmra.mxu0 %v37
    %v134 = vpop.f32.mrf.mxu0
    %v135 = vadd.f32 0.0, %v134
    %v136 = vpop.f32.mrf.mxu0
    %137 = vdwg.mxu0
    %s138 = scalar_lea.vmem %s1, 64
    %v139 = vld [vmem:[%s138] sm:$0xff]
    %v140 = vld [vmem:[%s138 + $0x8] sm:$0xff]
    %v141 = vld [vmem:[%s138 + $0x10] sm:$0xff]
    %v142 = vld [vmem:[%s138 + $0x18] sm:$0xff]
    %v143 = vld [vmem:[%s138 + $0x20] sm:$0xff]
    %v144 = vld [vmem:[%s138 + $0x28] sm:$0xff]
    %v145 = vld [vmem:[%s138 + $0x30] sm:$0xff]
    %v146 = vld [vmem:[%s138 + $0x38] sm:$0xff]
    %v148 = vsel %vm32, %v139, 0
    %v151 = vsel %vm32, %v140, 0
    %v154 = vsel %vm32, %v141, 0
    %v157 = vsel %vm32, %v142, 0
    %v160 = vsel %vm32, %v143, 0
    %v163 = vsel %vm32, %v144, 0
    %v166 = vsel %vm32, %v145, 0
    %v169 = vsel %vm32, %v146, 0
    %171 = vmatprep.subr.mxu0 0.0
    %172 = vmatpush1.xpose.msra.mxu0 0.0
    %173 = vmatprep.subr.mxu0 0.0
    %174 = vmatpush1.xpose.msra.mxu0 0.0
    %175 = vmatprep.subr.mxu0 0.0
    %176 = vmatpush1.xpose.msra.mxu0 0.0
    %177 = vmatprep.subr.mxu0 0.0
    %178 = vmatpush1.xpose.msra.mxu0 0.0
    %179 = vmatprep.subr.mxu0 0.0
    %180 = vmatpush1.xpose.msra.mxu0 0.0
    %181 = vmatprep.subr.mxu0 0.0
    %182 = vmatpush1.xpose.msra.mxu0 0.0
    %183 = vmatprep.subr.mxu0 0.0
    %184 = vmatpush1.xpose.msra.mxu0 0.0
    %185 = vmatprep.subr.mxu0 0.0
    %186 = vmatpush1.xpose.msra.mxu0 0.0
    %187 = vmatprep.subr.mxu0 0.0
    %188 = vmatpush1.xpose.msra.mxu0 %v169
    %189 = vmatprep.subr.mxu0 0.0
    %190 = vmatpush1.xpose.msra.mxu0 %v166
    %191 = vmatprep.subr.mxu0 0.0
    %192 = vmatpush1.xpose.msra.mxu0 %v163
    %193 = vmatprep.subr.mxu0 0.0
    %194 = vmatpush1.xpose.msra.mxu0 %v160
    %195 = vmatprep.subr.mxu0 0.0
    %196 = vmatpush1.xpose.msra.mxu0 %v157
    %197 = vmatprep.subr.mxu0 0.0
    %198 = vmatpush1.xpose.msra.mxu0 %v154
    %199 = vmatprep.subr.mxu0 0.0
    %200 = vmatpush1.xpose.msra.mxu0 %v151
    %201 = vmatprep.subr.mxu0 0.0
    %202 = vmatpush1.xpose.msra.mxu0 %v148
    %203 = vmatprep.subr.mxu0 0.0
    %204 = vmatpush2.xpose.msra.mxu0 0.0
    %205 = vmatprep.subr.mxu0 0.0
    %206 = vmatpush2.xpose.msra.mxu0 0.0
    %207 = vmatprep.subr.mxu0 0.0
    %208 = vmatpush2.xpose.msra.mxu0 0.0
    %209 = vmatprep.subr.mxu0 0.0
    %210 = vmatpush2.xpose.msra.mxu0 0.0
    %211 = vmatprep.subr.mxu0 0.0
    %212 = vmatpush2.xpose.msra.mxu0 0.0
    %213 = vmatprep.subr.mxu0 0.0
    %214 = vmatpush2.xpose.msra.mxu0 0.0
    %215 = vmatprep.subr.mxu0 0.0
    %216 = vmatpush2.xpose.msra.mxu0 0.0
    %217 = vmatprep.subr.mxu0 0.0
    %218 = vmatpush2.xpose.msra.mxu0 0.0
    %219 = vmatprep.subr.mxu0 0.0
    %220 = vmatpush2.xpose.msra.mxu0 0.0
    %221 = vmatprep.subr.mxu0 0.0
    %222 = vmatpush2.xpose.msra.mxu0 0.0
    %223 = vmatprep.subr.mxu0 0.0
    %224 = vmatpush2.xpose.msra.mxu0 0.0
    %225 = vmatprep.subr.mxu0 0.0
    %226 = vmatpush2.xpose.msra.mxu0 0.0
    %227 = vmatprep.subr.mxu0 0.0
    %228 = vmatpush2.xpose.msra.mxu0 0.0
    %229 = vmatprep.subr.mxu0 0.0
    %230 = vmatpush2.xpose.msra.mxu0 0.0
    %231 = vmatprep.subr.mxu0 0.0
    %232 = vmatpush2.xpose.msra.mxu0 0.0
    %233 = vmatprep.subr.mxu0 0.0
    %234 = vmatpush2.xpose.msra.mxu0 0.0
    %235 = vmatprep.mubr.f32.mxu0 0.0
    %236 = vmatmul.mubr.f32.gmra.mxu0 %v34
    %v237 = vpop.f32.mrf.mxu0
    %v238 = vadd.f32 0.0, %v237
    %v239 = vpop.f32.mrf.mxu0
    %240 = vmatprep.mubr.f32.mxu0 0.0
    %241 = vmatmul.mubr.f32.gmra.mxu0 %v37
    %v242 = vpop.f32.mrf.mxu0
    %v243 = vadd.f32 0.0, %v242
    %v244 = vpop.f32.mrf.mxu0
    %245 = vdwg.mxu0
    %v246 = vxor.u32 %v238, 2147483648
    %v247 = vxor.u32 %v243, 2147483648
    %v248 = vmul.f32 %v246, 1.442695
    %v249 = vpow.pop %v248
    %v250 = vmul.f32 %v247, 1.442695
    %v251 = vpow.pop %v250
    %v252 = vadd.f32 %v249, 1.0
    %v253 = vadd.f32 %v251, 1.0
    %v254 = vrcp.pop %v252
    %v255 = vmul.f32 1.0, %v254
    %v256 = vrcp.pop %v253
    %v257 = vmul.f32 1.0, %v256
    %v258 = vmul.f32 %v238, %v255
    %v259 = vmul.f32 %v243, %v257
    %v260 = vmul.f32 %v130, %v258
    %v261 = vmul.f32 %v135, %v259
    %v262 = vld [vmem:[%s2] sm:$0xff]
    %v263 = vld [vmem:[%s2 + $0x8] sm:$0xff]
    %v264 = vld [vmem:[%s2 + $0x10] sm:$0xff]
    %v265 = vld [vmem:[%s2 + $0x18] sm:$0xff]
    %v266 = vld [vmem:[%s2 + $0x20] sm:$0xff]
    %v267 = vld [vmem:[%s2 + $0x28] sm:$0xff]
    %v268 = vld [vmem:[%s2 + $0x30] sm:$0xff]
    %v269 = vld [vmem:[%s2 + $0x38] sm:$0xff]
    %v270 = vld [vmem:[#allocation2] sm:$0xff]
    %v271 = vld [vmem:[#allocation2 + $0x8] sm:$0xff]
    %vm272 = vcmask 523264
    %v274 = vsel %vm272, %v260, 0
    %v277 = vsel %vm272, %v261, 0
    %279 = vmatprep.subr.mxu0 0.0
    %280 = vmatpush1.msra.mxu0 0.0
    %281 = vmatprep.subr.mxu0 0.0
    %282 = vmatpush1.msra.mxu0 0.0
    %283 = vmatprep.subr.mxu0 0.0
    %284 = vmatpush1.msra.mxu0 0.0
    %285 = vmatprep.subr.mxu0 0.0
    %286 = vmatpush1.msra.mxu0 0.0
    %287 = vmatprep.subr.mxu0 0.0
    %288 = vmatpush1.msra.mxu0 0.0
    %289 = vmatprep.subr.mxu0 0.0
    %290 = vmatpush1.msra.mxu0 0.0
    %291 = vmatprep.subr.mxu0 0.0
    %292 = vmatpush1.msra.mxu0 0.0
    %293 = vmatprep.subr.mxu0 0.0
    %294 = vmatpush1.msra.mxu0 0.0
    %295 = vmatprep.subr.mxu0 0.0
    %296 = vmatpush1.msra.mxu0 %v269
    %297 = vmatprep.subr.mxu0 0.0
    %298 = vmatpush1.msra.mxu0 %v268
    %299 = vmatprep.subr.mxu0 0.0
    %300 = vmatpush1.msra.mxu0 %v267
    %301 = vmatprep.subr.mxu0 0.0
    %302 = vmatpush1.msra.mxu0 %v266
    %303 = vmatprep.subr.mxu0 0.0
    %304 = vmatpush1.msra.mxu0 %v265
    %305 = vmatprep.subr.mxu0 0.0
    %306 = vmatpush1.msra.mxu0 %v264
    %307 = vmatprep.subr.mxu0 0.0
    %308 = vmatpush1.msra.mxu0 %v263
    %309 = vmatprep.subr.mxu0 0.0
    %310 = vmatpush1.msra.mxu0 %v262
    %311 = vmatprep.subr.mxu0 0.0
    %312 = vmatpush2.msra.mxu0 0.0
    %313 = vmatprep.subr.mxu0 0.0
    %314 = vmatpush2.msra.mxu0 0.0
    %315 = vmatprep.subr.mxu0 0.0
    %316 = vmatpush2.msra.mxu0 0.0
    %317 = vmatprep.subr.mxu0 0.0
    %318 = vmatpush2.msra.mxu0 0.0
    %319 = vmatprep.subr.mxu0 0.0
    %320 = vmatpush2.msra.mxu0 0.0
    %321 = vmatprep.subr.mxu0 0.0
    %322 = vmatpush2.msra.mxu0 0.0
    %323 = vmatprep.subr.mxu0 0.0
    %324 = vmatpush2.msra.mxu0 0.0
    %325 = vmatprep.subr.mxu0 0.0
    %326 = vmatpush2.msra.mxu0 0.0
    %327 = vmatprep.subr.mxu0 0.0
    %328 = vmatpush2.msra.mxu0 0.0
    %329 = vmatprep.subr.mxu0 0.0
    %330 = vmatpush2.msra.mxu0 0.0
    %331 = vmatprep.subr.mxu0 0.0
    %332 = vmatpush2.msra.mxu0 0.0
    %333 = vmatprep.subr.mxu0 0.0
    %334 = vmatpush2.msra.mxu0 0.0
    %335 = vmatprep.subr.mxu0 0.0
    %336 = vmatpush2.msra.mxu0 0.0
    %337 = vmatprep.subr.mxu0 0.0
    %338 = vmatpush2.msra.mxu0 0.0
    %339 = vmatprep.subr.mxu0 0.0
    %340 = vmatpush2.msra.mxu0 0.0
    %341 = vmatprep.subr.mxu0 0.0
    %342 = vmatpush2.msra.mxu0 0.0
    %343 = vmatprep.mubr.f32.mxu0 0.0
    %344 = vmatmul.mubr.f32.gmra.mxu0 %v274
    %v345 = vpop.f32.mrf.mxu0
    %v346 = vadd.f32 0.0, %v345
    %v347 = vpop.f32.mrf.mxu0
    %348 = vmatprep.mubr.f32.mxu0 0.0
    %349 = vmatmul.mubr.f32.gmra.mxu0 %v277
    %v350 = vpop.f32.mrf.mxu0
    %v351 = vadd.f32 0.0, %v350
    %v352 = vpop.f32.mrf.mxu0
    %353 = vdwg.mxu0
    %v354 = vadd.f32 %v270, %v346
    %v355 = vadd.f32 %v271, %v351
    %356 = vst.msk [vmem:[#allocation2] sm:$0xff] %vm32, %v354
    %357 = vst.msk [vmem:[#allocation2 + $0x8] sm:$0xff] %vm32, %v355
    // Predicated region
    $region18: #{tpu_custom_call.1} parent=1 // pred_check
      %p358 = pneg %p15
    $region19: #{tpu_custom_call.1} parent=1 // pred_check_branch
      %360 = sbr.rel (%p358) target = $region21
    $region20: #{tpu_custom_call.1} parent=1 // pred_region
      %v361 = vld [vmem:[#allocation2] sm:$0xff]
      %v362 = vld [vmem:[#allocation2 + $0x8] sm:$0xff]
      %363 = vst.msk [vmem:[#allocation3] sm:$0xff] %vm32, %v361
      %364 = vst.msk [vmem:[#allocation3 + $0x8] sm:$0xff] %vm32, %v362
    $region21: #{tpu_custom_call.1} parent=1 // pred_fallthru
      _
    // Predicated region
    $region22: #{tpu_custom_call.1} parent=1 // pred_check
      _
    $region23: #{tpu_custom_call.1} parent=1 // pred_check_branch
      %366 = sbr.rel (0) target = $region25
    $region24: #{tpu_custom_call.1} parent=1 // pred_region
      %s368 = ssub.s32 256, 256
      %369 = vsyncadd [#allocation4], %s368
      %s370 = sshll.u32 [#allocation3], 4
      %s371 = int_to_ptr.vmem [resolvable:$true] %s370
      %376 = dma.vmem_to_hbm [thread:$0]  %s371, 256, %s3, [#allocation4], 128, 128, 8
    $region25: #{tpu_custom_call.1} parent=1 // pred_fallthru
      _
    // Predicated region
    $region26: #{tpu_custom_call.1} parent=1 // pred_check
      _
    $region27: #{tpu_custom_call.1} parent=1 // pred_check_branch
      %378 = sbr.rel (0) target = $region29
    $region28: #{tpu_custom_call.1} parent=1 // pred_region
      %379 = dma.done [#allocation4], 256
    $region29: #{tpu_custom_call.1} parent=1 // pred_fallthru
      _
    %380 = vsyncpa [#allocation4], 1

</llo_original>
